<compile_context>
chip_gen: v6e
topology: v6e:2x2x1
jax: 0.10.0
libtpu: 0.0.40
codegen_flags: <defaults>
</compile_context>

<pallas_src>
import functools

import jax
import jax.numpy as jnp
from jax.experimental import pallas as pl
from jax.experimental.pallas import tpu as pltpu


def _round_up(x, m):
    return ((x + m - 1) // m) * m


def _cdiv(a, b):
    return -(-a // b)


def qnet_kernel(x_ref, w_ref, b_ref, out_ref, *, obs_p):
    """Fused dueling forward on one batch tile.

    w_ref rows (bf16, all padded rows/cols are exactly zero):
      [0, obs_p)                     fc1 weight, padded to LANES output cols
      [obs_p, obs_p + LANES)         fused [value | advantage] hidden weight
      [obs_p + LANES, obs_p+2*LANES) fused output weight with the dueling
                                     combine pre-folded in (see pack_params)
    b_ref rows (f32): 0 -> fc1 bias, 1 -> fused hidden bias, 2 -> fused output
    bias (already mean-centered + value bias folded in).
    """
    lanes = out_ref.shape[-1]

    x = x_ref[...]                                           # (TB, obs_p) bf16

    w1 = w_ref[0:obs_p, :]                                   # (obs_p, LANES)
    wb = w_ref[obs_p:obs_p + lanes, :]                       # (LANES, LANES)
    wo = w_ref[obs_p + lanes:obs_p + 2 * lanes, :]           # (LANES, LANES)

    b1 = b_ref[0:1, :]                                       # (1, LANES) f32
    bb = b_ref[1:2, :]
    bo = b_ref[2:3, :]

    # fc1 + ReLU  (padded lanes stay exactly 0: zero weights + zero bias)
    h = jnp.maximum(jnp.dot(x, w1, preferred_element_type=jnp.float32) + b1, 0.0)

    # fused value|advantage hidden layer + ReLU (one MXU pass instead of two)
    hb = jnp.maximum(
        jnp.dot(h.astype(wb.dtype), wb, preferred_element_type=jnp.float32) + bb,
        0.0)

    # fused output layer with the dueling combine folded into the weights.
    # Columns >= n_actions are exactly zero; no epilogue needed.
    q = jnp.dot(hb.astype(wo.dtype), wo, preferred_element_type=jnp.float32) + bo

    out_ref[...] = q.astype(out_ref.dtype)                   # lane-dense store


def pack_params(params, n_observations, n_actions, filter_num,
                weight_dtype=jnp.bfloat16):
    """Pack the 10 QNet tensors into one weight slab + one bias slab.

    The dueling combine  Q = v + a - mean(a)  is folded into the output block:
      rows [0,F)  (value hidden)     -> wov broadcast to every action column
      rows [F,2F) (advantage hidden) -> woa mean-centered across actions
      bias_j = bov + boa_j - mean(boa)
    """
    F = filter_num
    obs_p = _round_up(n_observations, 16)                # bf16 sublane aligned
    lanes = _round_up(max(2 * F, n_actions), 128)

    w_slab = jnp.zeros((obs_p + 2 * lanes, lanes), jnp.float32)
    b_slab = jnp.zeros((3, lanes), jnp.float32)

    # fc1
    w_slab = w_slab.at[0:n_observations, 0:F].set(params["w1"])
    b_slab = b_slab.at[0, 0:F].set(params["b1"][0])

    # fused hidden layer: value -> cols [0,F), advantage -> cols [F,2F)
    r0 = obs_p
    w_slab = w_slab.at[r0:r0 + F, 0:F].set(params["wv"])
    w_slab = w_slab.at[r0:r0 + F, F:2 * F].set(params["wa"])
    b_slab = b_slab.at[1, 0:F].set(params["bv"][0])
    b_slab = b_slab.at[1, F:2 * F].set(params["ba"][0])

    # fused output layer with dueling combine pre-folded
    r1 = obs_p + lanes
    wov = params["wov"][:, 0]                                        # (F,)
    bov = params["bov"][0, 0]
    woa_c = params["woa"] - jnp.mean(params["woa"], axis=1, keepdims=True)
    boa_c = params["boa"][0] - jnp.mean(params["boa"][0])

    w_slab = w_slab.at[r1:r1 + F, 0:n_actions].set(
        jnp.broadcast_to(wov[:, None], (F, n_actions)))
    w_slab = w_slab.at[r1 + F:r1 + 2 * F, 0:n_actions].set(woa_c)
    b_slab = b_slab.at[2, 0:n_actions].set(boa_c + bov)

    # Weights in bf16 (MXU-native, half the DMA bytes); biases stay f32.
    return w_slab.astype(weight_dtype), b_slab, obs_p, lanes


def _choose_tile(B):
    """Pick (tile_rows, padded_batch). >=2 grid steps when B>=32 (v7x 2 TCs)."""
    if B < 32:
        return B, B                               # single full-array tile
    n_tiles = max(2, _cdiv(B, 4096))              # cap tile at 4096 rows
    tb = _round_up(_cdiv(B, n_tiles), 16)         # bf16 sublane aligned
    b_p = _round_up(B, tb)
    return tb, b_p


def qnet_forward(x, w_slab, b_slab, n_actions, obs_p, lanes):
    """x: (B, n_obs) -> (B, n_actions) f32 Q-values."""
    B, n_obs = x.shape
    compute_dtype = w_slab.dtype

    tb, b_p = _choose_tile(B)

    # Skip the zero-pad copy when no padding is actually needed.
    if b_p != B or obs_p != n_obs:
        x_p = (jnp.zeros((b_p, obs_p), compute_dtype)
               .at[:B, :n_obs].set(x.astype(compute_dtype)))
    else:
        x_p = x.astype(compute_dtype)

    kernel = functools.partial(qnet_kernel, obs_p=obs_p)
    n_rows = obs_p + 2 * lanes

    flops = 2 * b_p * lanes * (obs_p + 2 * lanes)
    bytes_accessed = (b_p * obs_p * x_p.dtype.itemsize
                      + n_rows * lanes * w_slab.dtype.itemsize
                      + 3 * lanes * b_slab.dtype.itemsize
                      + b_p * lanes * 4)

    out = pl.pallas_call(
        kernel,
        out_shape=jax.ShapeDtypeStruct((b_p, lanes), jnp.float32),
        grid=(b_p // tb,),
        in_specs=[
            pl.BlockSpec((tb, obs_p), lambda i: (i, 0)),      # x batch tile
            pl.BlockSpec((n_rows, lanes), lambda i: (0, 0)),  # weight slab (resident)
            pl.BlockSpec((3, lanes), lambda i: (0, 0)),       # bias slab (resident)
        ],
        out_specs=pl.BlockSpec((tb, lanes), lambda i: (i, 0)),
        compiler_params=pltpu.CompilerParams(
            dimension_semantics=("parallel",)),
        cost_estimate=pl.CostEstimate(
            flops=flops, transcendentals=0, bytes_accessed=bytes_accessed),
    )(x_p, w_slab, b_slab)

    return out[:B, :n_actions]


def init_params(key, n_observations, n_actions, filter_num):
    """Deterministic synthetic init (uniform, like PyTorch's default scale)."""
    ks = jax.random.split(key, 10)

    def lin(kw, kb, fan_in, fan_out):
        bound = 1.0 / jnp.sqrt(fan_in)
        w = jax.random.uniform(kw, (fan_in, fan_out), jnp.float32, -bound, bound)
        b = jax.random.uniform(kb, (1, fan_out), jnp.float32, -bound, bound)
        return w, b

    w1, b1 = lin(ks[0], ks[1], n_observations, filter_num)
    wv, bv = lin(ks[2], ks[3], filter_num, filter_num)
    wa, ba = lin(ks[4], ks[5], filter_num, filter_num)
    wov, bov = lin(ks[6], ks[7], filter_num, 1)
    woa, boa = lin(ks[8], ks[9], filter_num, n_actions)
    return dict(w1=w1, b1=b1, wv=wv, bv=bv, wa=wa, ba=ba,
                wov=wov, bov=bov, woa=woa, boa=boa)


def qnet_reference(x, p):
    """Pure-JAX f32 reference matching the PyTorch forward."""
    h = jnp.maximum(x @ p["w1"] + p["b1"], 0.0)
    v = jnp.maximum(h @ p["wv"] + p["bv"], 0.0) @ p["wov"] + p["bov"]
    a = jnp.maximum(h @ p["wa"] + p["ba"], 0.0) @ p["woa"] + p["boa"]
    return v + a - jnp.mean(a, axis=1, keepdims=True)


if __name__ == "__main__":
    key = jax.random.PRNGKey(0)
    k_x, k_p = jax.random.split(key)

    B = 8
    n_observations = 32
    n_actions = 8
    filter_num = 32

    x = jax.random.normal(k_x, (B, n_observations), dtype=jnp.float32)
    params = init_params(k_p, n_observations, n_actions, filter_num)

    w_slab, b_slab, obs_p, lanes = pack_params(
        params, n_observations, n_actions, filter_num)

    out = qnet_forward(x, w_slab, b_slab, n_actions, obs_p, lanes)
    out = jax.block_until_ready(out)

    ref = qnet_reference(x, params)
    assert out.shape == (B, n_actions)
    # bf16 weights / inputs in the kernel (f32 accumulate) -> loosened tolerance
    # vs. the full-f32 reference.
    assert jnp.allclose(out, ref, atol=3e-2, rtol=3e-2), "mismatch vs reference"

    print("KERNEL_OK")
</pallas_src>

<mosaic_0001>
module attributes {stable_mosaic.version = 11 : i64} {
  func.func @qnet_kernel(%arg0: i32, %arg1: memref<8x32xbf16, #tpu.memory_space<vmem>>, %arg2: memref<288x128xbf16, #tpu.memory_space<vmem>>, %arg3: memref<3x128xf32, #tpu.memory_space<vmem>>, %arg4: memref<8x128xf32, #tpu.memory_space<vmem>>) attributes {dimension_semantics = [#tpu.dimension_semantics<parallel>], iteration_bounds = array<i64: 1>, scalar_prefetch = 0 : i64, scratch_operands = 0 : i64, tpu.core_type = #tpu.core_type<tc>, window_params = [{transform_indices = @transform_0, window_bounds = array<i64: 8, 32>}, {pipeline_mode = #tpu.pipeline_mode<synchronous>, transform_indices = @transform_1, window_bounds = array<i64: 288, 128>}, {pipeline_mode = #tpu.pipeline_mode<synchronous>, transform_indices = @transform_2, window_bounds = array<i64: 3, 128>}, {transform_indices = @transform_3, window_bounds = array<i64: 8, 128>}]} {
    %c0 = arith.constant 0 : index
    %c0_0 = arith.constant 0 : index
    %0 = vector.load %arg1[%c0, %c0_0] : memref<8x32xbf16, #tpu.memory_space<vmem>>, vector<8x32xbf16>
    %c0_1 = arith.constant 0 : index
    %c0_2 = arith.constant 0 : index
    %1 = vector.load %arg2[%c0_1, %c0_2] : memref<288x128xbf16, #tpu.memory_space<vmem>>, vector<32x128xbf16>
    %c32 = arith.constant 32 : index
    %c0_3 = arith.constant 0 : index
    %2 = vector.load %arg2[%c32, %c0_3] : memref<288x128xbf16, #tpu.memory_space<vmem>>, vector<128x128xbf16>
    %c160 = arith.constant 160 : index
    %c0_4 = arith.constant 0 : index
    %3 = vector.load %arg2[%c160, %c0_4] : memref<288x128xbf16, #tpu.memory_space<vmem>>, vector<128x128xbf16>
    %c0_5 = arith.constant 0 : index
    %c0_6 = arith.constant 0 : index
    %4 = vector.load %arg3[%c0_5, %c0_6] : memref<3x128xf32, #tpu.memory_space<vmem>>, vector<1x128xf32>
    %c1 = arith.constant 1 : index
    %c0_7 = arith.constant 0 : index
    %5 = vector.load %arg3[%c1, %c0_7] : memref<3x128xf32, #tpu.memory_space<vmem>>, vector<1x128xf32>
    %c2 = arith.constant 2 : index
    %c0_8 = arith.constant 0 : index
    %6 = vector.load %arg3[%c2, %c0_8] : memref<3x128xf32, #tpu.memory_space<vmem>>, vector<1x128xf32>
    %cst = arith.constant dense<0.000000e+00> : vector<8x128xf32>
    %7 = tpu.matmul %0, %1, %cst {dimension_numbers = #tpu.dot_dimension_numbers<[1], [0], [0], [1], [0, 0, 1, 1], [], []>} : vector<8x32xbf16>, vector<32x128xbf16>, vector<8x128xf32> -> vector<8x128xf32>
    %8 = vector.broadcast %4 : vector<1x128xf32> to vector<8x128xf32>
    %9 = arith.addf %7, %8 : vector<8x128xf32>
    %cst_9 = arith.constant 0.000000e+00 : f32
    %10 = vector.broadcast %cst_9 : f32 to vector<8x128xf32>
    %11 = arith.maximumf %9, %10 : vector<8x128xf32>
    %12 = arith.truncf %11 : vector<8x128xf32> to vector<8x128xbf16>
    %cst_10 = arith.constant dense<0.000000e+00> : vector<8x128xf32>
    %13 = tpu.matmul %12, %2, %cst_10 {dimension_numbers = #tpu.dot_dimension_numbers<[1], [0], [0], [1], [0, 0, 1, 1], [], []>} : vector<8x128xbf16>, vector<128x128xbf16>, vector<8x128xf32> -> vector<8x128xf32>
    %14 = vector.broadcast %5 : vector<1x128xf32> to vector<8x128xf32>
    %15 = arith.addf %13, %14 : vector<8x128xf32>
    %cst_11 = arith.constant 0.000000e+00 : f32
    %16 = vector.broadcast %cst_11 : f32 to vector<8x128xf32>
    %17 = arith.maximumf %15, %16 : vector<8x128xf32>
    %18 = arith.truncf %17 : vector<8x128xf32> to vector<8x128xbf16>
    %cst_12 = arith.constant dense<0.000000e+00> : vector<8x128xf32>
    %19 = tpu.matmul %18, %3, %cst_12 {dimension_numbers = #tpu.dot_dimension_numbers<[1], [0], [0], [1], [0, 0, 1, 1], [], []>} : vector<8x128xbf16>, vector<128x128xbf16>, vector<8x128xf32> -> vector<8x128xf32>
    %20 = vector.broadcast %6 : vector<1x128xf32> to vector<8x128xf32>
    %21 = arith.addf %19, %20 : vector<8x128xf32>
    %c0_13 = arith.constant 0 : index
    %c0_14 = arith.constant 0 : index
    %22 = vector.load %arg4[%c0_13, %c0_14] : memref<8x128xf32, #tpu.memory_space<vmem>>, vector<8x128xf32>
    tpu.vector_store %arg4[%c0_13, %c0_14], %21 {strides = array<i32>} : memref<8x128xf32, #tpu.memory_space<vmem>>, vector<8x128xf32>,
    return
  }
  func.func @transform_0(%arg0: i32) -> (i32, i32) {
    %c0_i32 = arith.constant 0 : i32
    %c0_i32_0 = arith.constant 0 : i32
    return %arg0, %c0_i32 : i32, i32
  }
  func.func @transform_1(%arg0: i32) -> (i32, i32) {
    %c0_i32 = arith.constant 0 : i32
    %c0_i32_0 = arith.constant 0 : i32
    %c0_i32_1 = arith.constant 0 : i32
    return %c0_i32, %c0_i32_0 : i32, i32
  }
  func.func @transform_2(%arg0: i32) -> (i32, i32) {
    %c0_i32 = arith.constant 0 : i32
    %c0_i32_0 = arith.constant 0 : i32
    %c0_i32_1 = arith.constant 0 : i32
    return %c0_i32, %c0_i32_0 : i32, i32
  }
  func.func @transform_3(%arg0: i32) -> (i32, i32) {
    %c0_i32 = arith.constant 0 : i32
    %c0_i32_0 = arith.constant 0 : i32
    return %arg0, %c0_i32 : i32, i32
  }
}

</mosaic_0001>

<llo_original>
// kernel: tpu_custom_call.1
$region0: #{tpu_custom_call.1}
  #allocation0 [shape = 'u32[]', space=smem, size = 0x4, offset = 0x4, fixed_abs, tag = 'smem constant byte address 0x4 - core index']
  #allocation1 [shape = 'u32[144,128]{1,0:T(1,128)}', space=vmem, size = 0x12000, scoped, tag = 'internal scratch']
  %s0 = inlined_call_operand.hbm [shape: bf16[8,32], index: 0, kind: input, shape index: {}]
  %s1 = inlined_call_operand.hbm [shape: bf16[288,128], index: 1, kind: input, shape index: {}]
  %s2 = inlined_call_operand.hbm [shape: f32[3,128], index: 2, kind: input, shape index: {}]
  %s3 = inlined_call_operand.hbm [shape: f32[8,128], index: 3, kind: output, shape index: {}]
  %s4 = sld [smem:[#allocation0]]
  $region34: #{tpu_custom_call.1} parent=0
    _
  %s6 = ssub.s32 1, %s4
  %s7 = scalar_select 0, %s6, %s4
  $region1: #{tpu_custom_call.1} parent=0
    #allocation2 [shape = 'u8[2048]{0}', space=vmem, size = 0x800, scoped, tag = 'input window, operand 0, single buffered']
    #allocation3 [shape = 's32[1]{0}', space=sflag, size = 0x4, scoped, tag = 'scoped memory for tpu_custom_call.1']
    #allocation4 [shape = 's32[1]{0}', space=sflag, size = 0x4, scoped, tag = 'scoped memory for tpu_custom_call.1']
    #allocation5 [shape = 'u8[73728]{0}', space=vmem, size = 0x12000, scoped, tag = 'input window, operand 1, single buffered']
    #allocation6 [shape = 's32[1]{0}', space=sflag, size = 0x4, scoped, tag = 'scoped memory for tpu_custom_call.1']
    #allocation7 [shape = 'u8[2048]{0}', space=vmem, size = 0x800, scoped, tag = 'input window, operand 2, single buffered']
    #allocation8 [shape = 'u8[4096]{0}', space=vmem, size = 0x1000, scoped, tag = 'output window, operand 0, single buffered']
    %8 = vsyncpa [#allocation3], 0
    %9 = vsyncpa [#allocation6], 0
    %10 = vsyncpa [#allocation4], 0
    // Predicated region
    $region2: #{tpu_custom_call.1} parent=1 // pred_check
      _
    $region3: #{tpu_custom_call.1} parent=1 // pred_check_branch
      %12 = sbr.rel (0) target = $region5
    $region4: #{tpu_custom_call.1} parent=1 // pred_region
      %s14 = ssub.s32 64, 64
      %15 = vsyncadd [#allocation3], %s14
      %s17 = sshll.u32 [#allocation2], 4
      %s18 = int_to_ptr.vmem [resolvable:$true] %s17
      %20 = dma.hbm_to_vmem [thread:$0]  %s0, 64, %s18, [#allocation3]
    $region5: #{tpu_custom_call.1} parent=1 // pred_fallthru
      _
    // Predicated region
    $region6: #{tpu_custom_call.1} parent=1 // pred_check
      _
    $region7: #{tpu_custom_call.1} parent=1 // pred_check_branch
      %22 = sbr.rel (0) target = $region9
    $region8: #{tpu_custom_call.1} parent=1 // pred_region
      %s24 = ssub.s32 2304, 2304
      %25 = vsyncadd [#allocation6], %s24
      %s26 = sshll.u32 [#allocation5], 4
      %s27 = int_to_ptr.vmem [resolvable:$true] %s26
      %32 = dma.hbm_to_vmem [thread:$0]  %s1, 2304, %s27, [#allocation6], 64, 64, 4
    $region9: #{tpu_custom_call.1} parent=1 // pred_fallthru
      _
    // Predicated region
    $region10: #{tpu_custom_call.1} parent=1 // pred_check
      _
    $region11: #{tpu_custom_call.1} parent=1 // pred_check_branch
      %34 = sbr.rel (0) target = $region13
    $region12: #{tpu_custom_call.1} parent=1 // pred_region
      %s36 = ssub.s32 64, 64
      %37 = vsyncadd [#allocation6], %s36
      %s39 = sshll.u32 [#allocation7], 4
      %s40 = int_to_ptr.vmem [resolvable:$true] %s39
      %42 = dma.hbm_to_vmem [thread:$0]  %s2, 64, %s40, [#allocation6]
    $region13: #{tpu_custom_call.1} parent=1 // pred_fallthru
      _
    // Predicated region
    $region14: #{tpu_custom_call.1} parent=1 // pred_check
      _
    $region15: #{tpu_custom_call.1} parent=1 // pred_check_branch
      %44 = sbr.rel (0) target = $region17
    $region16: #{tpu_custom_call.1} parent=1 // pred_region
      %45 = dma.done [#allocation3], 64
    $region17: #{tpu_custom_call.1} parent=1 // pred_fallthru
      _
    // Predicated region
    $region18: #{tpu_custom_call.1} parent=1 // pred_check
      _
    $region19: #{tpu_custom_call.1} parent=1 // pred_check_branch
      %47 = sbr.rel (0) target = $region21
    $region20: #{tpu_custom_call.1} parent=1 // pred_region
      %48 = dma.done [#allocation6], 2304
    $region21: #{tpu_custom_call.1} parent=1 // pred_fallthru
      _
    // Predicated region
    $region22: #{tpu_custom_call.1} parent=1 // pred_check
      _
    $region23: #{tpu_custom_call.1} parent=1 // pred_check_branch
      %50 = sbr.rel (0) target = $region25
    $region24: #{tpu_custom_call.1} parent=1 // pred_region
      %51 = dma.done [#allocation6], 64
    $region25: #{tpu_custom_call.1} parent=1 // pred_fallthru
      _
    %v53 = vld [vmem:[#allocation2] sm:$0xf]
    %v54 = vld [vmem:[#allocation5] sm:$0xf]
    %v55 = vld [vmem:[#allocation5 + $0x4] sm:$0xf]
    %v56 = vld [vmem:[#allocation5 + $0x8] sm:$0xf]
    %v57 = vld [vmem:[#allocation5 + $0xc] sm:$0xf]
    %v58 = vld [vmem:[#allocation5 + $0x10] sm:$0xf]
    %v59 = vld [vmem:[#allocation5 + $0x14] sm:$0xf]
    %v60 = vld [vmem:[#allocation5 + $0x18] sm:$0xf]
    %v61 = vld [vmem:[#allocation5 + $0x1c] sm:$0xf]
    %v62 = vld [vmem:[#allocation5 + $0x20] sm:$0xf]
    %v63 = vld [vmem:[#allocation5 + $0x24] sm:$0xf]
    %v64 = vld [vmem:[#allocation5 + $0x28] sm:$0xf]
    %v65 = vld [vmem:[#allocation5 + $0x2c] sm:$0xf]
    %v66 = vld [vmem:[#allocation5 + $0x30] sm:$0xf]
    %v67 = vld [vmem:[#allocation5 + $0x34] sm:$0xf]
    %v68 = vld [vmem:[#allocation5 + $0x38] sm:$0xf]
    %v69 = vld [vmem:[#allocation5 + $0x3c] sm:$0xf]
    %v70 = vld [vmem:[#allocation5 + $0x40] sm:$0xf]
    %v71 = vld [vmem:[#allocation5 + $0x44] sm:$0xf]
    %v72 = vld [vmem:[#allocation5 + $0x48] sm:$0xf]
    %v73 = vld [vmem:[#allocation5 + $0x4c] sm:$0xf]
    %v74 = vld [vmem:[#allocation5 + $0x50] sm:$0xf]
    %v75 = vld [vmem:[#allocation5 + $0x54] sm:$0xf]
    %v76 = vld [vmem:[#allocation5 + $0x58] sm:$0xf]
    %v77 = vld [vmem:[#allocation5 + $0x5c] sm:$0xf]
    %v78 = vld [vmem:[#allocation5 + $0x60] sm:$0xf]
    %v79 = vld [vmem:[#allocation5 + $0x64] sm:$0xf]
    %v80 = vld [vmem:[#allocation5 + $0x68] sm:$0xf]
    %v81 = vld [vmem:[#allocation5 + $0x6c] sm:$0xf]
    %v82 = vld [vmem:[#allocation5 + $0x70] sm:$0xf]
    %v83 = vld [vmem:[#allocation5 + $0x74] sm:$0xf]
    %v84 = vld [vmem:[#allocation5 + $0x78] sm:$0xf]
    %v85 = vld [vmem:[#allocation5 + $0x7c] sm:$0xf]
    %v86 = vld [vmem:[#allocation5 + $0x80] sm:$0xf]
    %v87 = vld [vmem:[#allocation5 + $0x84] sm:$0xf]
    %v88 = vld [vmem:[#allocation5 + $0x88] sm:$0xf]
    %v89 = vld [vmem:[#allocation5 + $0x8c] sm:$0xf]
    %v90 = vld [vmem:[#allocation7] sm:$0x1]
    %v91 = vld [vmem:[#allocation7 + $0x1] sm:$0x1]
    %v92 = vld [vmem:[#allocation7 + $0x2] sm:$0x1]
    %v93 = vlaneseq
    %v94 = vshrl.u32 %v93, 7
    %v95 = vsub.s32 0, %v94
    %v96 = vrot.slane %v90, %v95
    %v101 = vunpack.c.l.b16 %v54
    %v102 = vunpack.c.l.b16 %v55
    %v103 = vunpack.c.l.b16 %v56
    %v104 = vunpack.c.l.b16 %v57
    %v105 = vpack.c.b16 %v102, %v101
    %v106 = vpack.c.b16 %v104, %v103
    %vm109 = vcmask 261120
    %v111 = vsel %vm109, %v53, 0
    %113 = vmatprep.subr.bf16.mxu0 0
    %114 = vmatpush1.bf16.msra.mxu0 0
    %115 = vmatprep.subr.bf16.mxu0 0
    %116 = vmatpush1.bf16.msra.mxu0 0
    %117 = vmatprep.subr.bf16.mxu0 0
    %118 = vmatpush1.bf16.msra.mxu0 0
    %119 = vmatprep.subr.bf16.mxu0 0
    %120 = vmatpush1.bf16.msra.mxu0 0
    %121 = vmatprep.subr.bf16.mxu0 0
    %122 = vmatpush1.bf16.msra.mxu0 0
    %123 = vmatprep.subr.bf16.mxu0 0
    %124 = vmatpush1.bf16.msra.mxu0 0
    %125 = vmatprep.subr.bf16.mxu0 0
    %126 = vmatpush1.bf16.msra.mxu0 %v106
    %127 = vmatprep.subr.bf16.mxu0 0
    %128 = vmatpush1.bf16.msra.mxu0 %v105
    %129 = vmatprep.subr.bf16.mxu0 0
    %130 = vmatpush2.bf16.msra.mxu0 0
    %131 = vmatprep.subr.bf16.mxu0 0
    %132 = vmatpush2.bf16.msra.mxu0 0
    %133 = vmatprep.subr.bf16.mxu0 0
    %134 = vmatpush2.bf16.msra.mxu0 0
    %135 = vmatprep.subr.bf16.mxu0 0
    %136 = vmatpush2.bf16.msra.mxu0 0
    %137 = vmatprep.subr.bf16.mxu0 0
    %138 = vmatpush2.bf16.msra.mxu0 0
    %139 = vmatprep.subr.bf16.mxu0 0
    %140 = vmatpush2.bf16.msra.mxu0 0
    %141 = vmatprep.subr.bf16.mxu0 0
    %142 = vmatpush2.bf16.msra.mxu0 0
    %143 = vmatprep.subr.bf16.mxu0 0
    %144 = vmatpush2.bf16.msra.mxu0 0
    %145 = vmatprep.mubr.bf16.mxu0 0
    %146 = vmatmul.mubr.bf16.gmra.mxu0 %v111
    %v147 = vpop.f32.mrf.mxu0
    %v148 = vadd.f32 %v96, %v147
    %v149 = vpop.f32.mrf.mxu0
    %v150 = vpop.f32.mrf.mxu0
    %v151 = vpop.f32.mrf.mxu0
    %152 = vdwg.mxu0
    %v153 = vmax.f32 %v148, 0.0
    %v154 = vpack.c.bf16 %v153, %v153
    %v155 = vlaneseq
    %v156 = vshrl.u32 %v155, 7
    %v157 = vsub.s32 0, %v156
    %v158 = vrot.slane %v91, %v157
    %v175 = vunpack.c.l.b16 %v58
    %v176 = vunpack.c.l.b16 %v59
    %v177 = vunpack.c.l.b16 %v60
    %v178 = vunpack.c.l.b16 %v61
    %v179 = vunpack.c.l.b16 %v62
    %v180 = vunpack.c.l.b16 %v63
    %v181 = vunpack.c.l.b16 %v64
    %v182 = vunpack.c.l.b16 %v65
    %v183 = vunpack.c.l.b16 %v66
    %v184 = vunpack.c.l.b16 %v67
    %v185 = vunpack.c.l.b16 %v68
    %v186 = vunpack.c.l.b16 %v69
    %v187 = vunpack.c.l.b16 %v70
    %v188 = vunpack.c.l.b16 %v71
    %v189 = vunpack.c.l.b16 %v72
    %v190 = vunpack.c.l.b16 %v73
    %v191 = vpack.c.b16 %v176, %v175
    %v192 = vpack.c.b16 %v178, %v177
    %v193 = vpack.c.b16 %v180, %v179
    %v194 = vpack.c.b16 %v182, %v181
    %v195 = vpack.c.b16 %v184, %v183
    %v196 = vpack.c.b16 %v186, %v185
    %v197 = vpack.c.b16 %v188, %v187
    %v198 = vpack.c.b16 %v190, %v189
    %207 = vmatprep.subr.bf16.mxu0 0
    %208 = vmatpush1.bf16.msra.mxu0 %v198
    %209 = vmatprep.subr.bf16.mxu0 0
    %210 = vmatpush1.bf16.msra.mxu0 %v197
    %211 = vmatprep.subr.bf16.mxu0 0
    %212 = vmatpush1.bf16.msra.mxu0 %v196
    %213 = vmatprep.subr.bf16.mxu0 0
    %214 = vmatpush1.bf16.msra.mxu0 %v195
    %215 = vmatprep.subr.bf16.mxu0 0
    %216 = vmatpush1.bf16.msra.mxu0 %v194
    %217 = vmatprep.subr.bf16.mxu0 0
    %218 = vmatpush1.bf16.msra.mxu0 %v193
    %219 = vmatprep.subr.bf16.mxu0 0
    %220 = vmatpush1.bf16.msra.mxu0 %v192
    %221 = vmatprep.subr.bf16.mxu0 0
    %222 = vmatpush1.bf16.msra.mxu0 %v191
    %223 = vmatprep.subr.bf16.mxu0 0
    %224 = vmatpush2.bf16.msra.mxu0 0
    %225 = vmatprep.subr.bf16.mxu0 0
    %226 = vmatpush2.bf16.msra.mxu0 0
    %227 = vmatprep.subr.bf16.mxu0 0
    %228 = vmatpush2.bf16.msra.mxu0 0
    %229 = vmatprep.subr.bf16.mxu0 0
    %230 = vmatpush2.bf16.msra.mxu0 0
    %231 = vmatprep.subr.bf16.mxu0 0
    %232 = vmatpush2.bf16.msra.mxu0 0
    %233 = vmatprep.subr.bf16.mxu0 0
    %234 = vmatpush2.bf16.msra.mxu0 0
    %235 = vmatprep.subr.bf16.mxu0 0
    %236 = vmatpush2.bf16.msra.mxu0 0
    %237 = vmatprep.subr.bf16.mxu0 0
    %238 = vmatpush2.bf16.msra.mxu0 0
    %239 = vmatprep.mubr.bf16.mxu0 0
    %240 = vmatmul.mubr.bf16.gmra.mxu0 %v154
    %v241 = vpop.f32.mrf.mxu0
    %v242 = vadd.f32 %v158, %v241
    %v243 = vpop.f32.mrf.mxu0
    %v244 = vpop.f32.mrf.mxu0
    %v245 = vpop.f32.mrf.mxu0
    %246 = vdwg.mxu0
    %v247 = vmax.f32 %v242, 0.0
    %v248 = vpack.c.bf16 %v247, %v247
    %v249 = vlaneseq
    %v250 = vshrl.u32 %v249, 7
    %v251 = vsub.s32 0, %v250
    %v252 = vrot.slane %v92, %v251
    %v269 = vunpack.c.l.b16 %v74
    %v270 = vunpack.c.l.b16 %v75
    %v271 = vunpack.c.l.b16 %v76
    %v272 = vunpack.c.l.b16 %v77
    %v273 = vunpack.c.l.b16 %v78
    %v274 = vunpack.c.l.b16 %v79
    %v275 = vunpack.c.l.b16 %v80
    %v276 = vunpack.c.l.b16 %v81
    %v277 = vunpack.c.l.b16 %v82
    %v278 = vunpack.c.l.b16 %v83
    %v279 = vunpack.c.l.b16 %v84
    %v280 = vunpack.c.l.b16 %v85
    %v281 = vunpack.c.l.b16 %v86
    %v282 = vunpack.c.l.b16 %v87
    %v283 = vunpack.c.l.b16 %v88
    %v284 = vunpack.c.l.b16 %v89
    %v285 = vpack.c.b16 %v270, %v269
    %v286 = vpack.c.b16 %v272, %v271
    %v287 = vpack.c.b16 %v274, %v273
    %v288 = vpack.c.b16 %v276, %v275
    %v289 = vpack.c.b16 %v278, %v277
    %v290 = vpack.c.b16 %v280, %v279
    %v291 = vpack.c.b16 %v282, %v281
    %v292 = vpack.c.b16 %v284, %v283
    %301 = vmatprep.subr.bf16.mxu0 0
    %302 = vmatpush1.bf16.msra.mxu0 %v292
    %303 = vmatprep.subr.bf16.mxu0 0
    %304 = vmatpush1.bf16.msra.mxu0 %v291
    %305 = vmatprep.subr.bf16.mxu0 0
    %306 = vmatpush1.bf16.msra.mxu0 %v290
    %307 = vmatprep.subr.bf16.mxu0 0
    %308 = vmatpush1.bf16.msra.mxu0 %v289
    %309 = vmatprep.subr.bf16.mxu0 0
    %310 = vmatpush1.bf16.msra.mxu0 %v288
    %311 = vmatprep.subr.bf16.mxu0 0
    %312 = vmatpush1.bf16.msra.mxu0 %v287
    %313 = vmatprep.subr.bf16.mxu0 0
    %314 = vmatpush1.bf16.msra.mxu0 %v286
    %315 = vmatprep.subr.bf16.mxu0 0
    %316 = vmatpush1.bf16.msra.mxu0 %v285
    %317 = vmatprep.subr.bf16.mxu0 0
    %318 = vmatpush2.bf16.msra.mxu0 0
    %319 = vmatprep.subr.bf16.mxu0 0
    %320 = vmatpush2.bf16.msra.mxu0 0
    %321 = vmatprep.subr.bf16.mxu0 0
    %322 = vmatpush2.bf16.msra.mxu0 0
    %323 = vmatprep.subr.bf16.mxu0 0
    %324 = vmatpush2.bf16.msra.mxu0 0
    %325 = vmatprep.subr.bf16.mxu0 0
    %326 = vmatpush2.bf16.msra.mxu0 0
    %327 = vmatprep.subr.bf16.mxu0 0
    %328 = vmatpush2.bf16.msra.mxu0 0
    %329 = vmatprep.subr.bf16.mxu0 0
    %330 = vmatpush2.bf16.msra.mxu0 0
    %331 = vmatprep.subr.bf16.mxu0 0
    %332 = vmatpush2.bf16.msra.mxu0 0
    %333 = vmatprep.mubr.bf16.mxu0 0
    %334 = vmatmul.mubr.bf16.gmra.mxu0 %v248
    %v335 = vpop.f32.mrf.mxu0
    %v336 = vadd.f32 %v252, %v335
    %v337 = vpop.f32.mrf.mxu0
    %v338 = vpop.f32.mrf.mxu0
    %v339 = vpop.f32.mrf.mxu0
    %340 = vdwg.mxu0
    %341 = vst [vmem:[#allocation8] sm:$0xff] %v336
    // Predicated region
    $region26: #{tpu_custom_call.1} parent=1 // pred_check
      _
    $region27: #{tpu_custom_call.1} parent=1 // pred_check_branch
      %343 = sbr.rel (0) target = $region29
    $region28: #{tpu_custom_call.1} parent=1 // pred_region
      %s345 = ssub.s32 128, 128
      %346 = vsyncadd [#allocation4], %s345
      %s348 = sshll.u32 [#allocation8], 4
      %s349 = int_to_ptr.vmem [resolvable:$true] %s348
      %351 = dma.vmem_to_hbm [thread:$0]  %s349, 128, %s3, [#allocation4]
    $region29: #{tpu_custom_call.1} parent=1 // pred_fallthru
      _
    // Predicated region
    $region30: #{tpu_custom_call.1} parent=1 // pred_check
      _
    $region31: #{tpu_custom_call.1} parent=1 // pred_check_branch
      %353 = sbr.rel (0) target = $region33
    $region32: #{tpu_custom_call.1} parent=1 // pred_region
      %354 = dma.done [#allocation4], 128
    $region33: #{tpu_custom_call.1} parent=1 // pred_fallthru
      _
    %355 = vsyncpa [#allocation3], 1
    %356 = vsyncpa [#allocation6], 1
    %357 = vsyncpa [#allocation4], 1

</llo_original>
